<compile_context>
chip_gen: v7x
topology: tpu7x:2x2x1
jax: 0.10.0
libtpu: 0.0.40
codegen_flags: <defaults>
</compile_context>

<pallas_src>
import math

import jax
import jax.numpy as jnp
from jax.experimental import pallas as pl
from jax.experimental.pallas import tpu as pltpu


_INV_SQRT2 = 1.0 / math.sqrt(2.0)


def _round_up(x, m):
    return ((x + m - 1) // m) * m


def feedforward_kernel(x_ref, w1_ref, b1_ref, w2_ref, b2_ref,
                       gamma_ref, beta_ref, o_ref):
    # x_ref: (tm, H) tile of tokens; all parameters are VMEM-resident.
    x = x_ref[...].astype(jnp.float32)
    w1 = w1_ref[...]
    w2 = w2_ref[...]
    mm_dtype = w1.dtype                      # fp32 or bf16 MXU input dtype

    # dense_1 : [tm, H] @ [H, 4H] + b1  (fp32 accumulation on the MXU)
    h = jnp.dot(x.astype(mm_dtype), w1, preferred_element_type=jnp.float32)
    h = h + b1_ref[...]

    # exact (erf-based) gelu, same as the PyTorch module
    h = h * 0.5 * (1.0 + jax.lax.erf(h * _INV_SQRT2))

    # dense_2 : [tm, 4H] @ [4H, H] + b2
    y = jnp.dot(h.astype(mm_dtype), w2, preferred_element_type=jnp.float32)
    y = y + b2_ref[...]

    # dropout: eval mode -> identity
    # TODO(synk): training-mode dropout (hidden_dropout=0.1) is not implemented.
    z = y + x                                 # residual add

    # LayerNorm over the last dim (biased variance, eps=1e-12)
    u = jnp.mean(z, axis=-1, keepdims=True)
    d = z - u
    s = jnp.mean(d * d, axis=-1, keepdims=True)
    zn = d * jax.lax.rsqrt(s + 1e-12)

    o_ref[...] = (gamma_ref[...] * zn + beta_ref[...]).astype(o_ref.dtype)


def feedforward(x, w1, b1, w2, b2, gamma, beta, *, tm=512, use_bf16=False):
    """x: [B, S, H] float32. Returns [B, S, H]."""
    B, S, H = x.shape
    inner = w1.shape[1]
    M = B * S

    # Row tile: as large as requested, but keep the grid at >= 2 steps so the
    # token axis can shard across both TensorCores on v7x.  Pad M to a multiple
    # of the tile (padded rows are dropped after the call).
    tm_eff = max(8, min(_round_up(tm, 8), _round_up(pl.cdiv(M, 2), 8)))
    M_pad = _round_up(M, tm_eff)
    grid = (M_pad // tm_eff,)

    x2d = x.reshape(M, H)
    if M_pad != M:
        x2d = jnp.pad(x2d, ((0, M_pad - M), (0, 0)))

    mm_dtype = jnp.bfloat16 if use_bf16 else w1.dtype
    w1c = w1.astype(mm_dtype)
    w2c = w2.astype(mm_dtype)
    b1_2d = b1.reshape(1, inner).astype(jnp.float32)
    b2_2d = b2.reshape(1, H).astype(jnp.float32)
    gamma_2d = gamma.reshape(1, H).astype(jnp.float32)
    beta_2d = beta.reshape(1, H).astype(jnp.float32)

    mm_bytes = jnp.dtype(mm_dtype).itemsize

    # Scoped-VMEM budget: x/out tiles double-buffered, weights single-buffered,
    # [tm, 4H] fp32 intermediates, plus headroom; floor of 32 MiB, cap 100 MiB.
    # TODO(synk): for very large H on v7x (64 MiB VMEM), tile the 4H axis with a
    # K-grid accumulator instead of keeping both full weights resident.
    vmem_est = (
        2 * 2 * tm_eff * H * 4                      # x + out tiles, double-buffered
        + (H * inner + inner * H) * mm_bytes        # W1 + W2, single-buffered
        + (inner + 3 * H) * 4                       # biases + LN params
        + 3 * tm_eff * inner * 4                    # activations / temporaries
    )
    vmem_limit = int(min(max(int(vmem_est * 1.5) + (1 << 20), 32 << 20), 100 << 20))

    cost = pl.CostEstimate(
        flops=2 * M_pad * H * inner * 2 + 10 * M_pad * inner + 12 * M_pad * H,
        transcendentals=M_pad * inner,
        bytes_accessed=2 * M_pad * H * 4 + 2 * H * inner * mm_bytes
                       + (inner + 3 * H) * 4,
    )

    const = dict(pipeline_mode=pl.Buffered(1))  # constant operands: no double buffer

    out = pl.pallas_call(
        feedforward_kernel,
        out_shape=jax.ShapeDtypeStruct((M_pad, H), x.dtype),
        grid_spec=pltpu.PrefetchScalarGridSpec(
            num_scalar_prefetch=0,
            grid=grid,
            in_specs=[
                pl.BlockSpec((tm_eff, H), lambda i: (i, 0)),          # x tile
                pl.BlockSpec((H, inner), lambda i: (0, 0), **const),  # W1
                pl.BlockSpec((1, inner), lambda i: (0, 0), **const),  # b1
                pl.BlockSpec((inner, H), lambda i: (0, 0), **const),  # W2
                pl.BlockSpec((1, H), lambda i: (0, 0), **const),      # b2
                pl.BlockSpec((1, H), lambda i: (0, 0), **const),      # LN weight
                pl.BlockSpec((1, H), lambda i: (0, 0), **const),      # LN bias
            ],
            out_specs=pl.BlockSpec((tm_eff, H), lambda i: (i, 0)),
        ),
        compiler_params=pltpu.CompilerParams(
            dimension_semantics=("parallel",),
            vmem_limit_bytes=vmem_limit),
        cost_estimate=cost,
    )(x2d, w1c, b1_2d, w2c, b2_2d, gamma_2d, beta_2d)

    if M_pad != M:
        out = out[:M]
    return out.reshape(B, S, H)


def reference(x, w1, b1, w2, b2, gamma, beta):
    h = jnp.dot(x, w1) + b1
    h = h * 0.5 * (1.0 + jax.lax.erf(h / math.sqrt(2.0)))
    y = jnp.dot(h, w2) + b2
    z = y + x
    u = jnp.mean(z, axis=-1, keepdims=True)
    s = jnp.mean((z - u) ** 2, axis=-1, keepdims=True)
    zn = (z - u) / jnp.sqrt(s + 1e-12)
    return gamma * zn + beta


if __name__ == "__main__":
    # config: c_hidden_dim=32, hidden_act='gelu', hidden_dropout=0.1 (eval -> identity)
    B, S, H = 2, 8, 32
    inner = 4 * H

    key = jax.random.PRNGKey(0)
    kx, k1, k2, k3, k4 = jax.random.split(key, 5)

    x = jax.random.normal(kx, (B, S, H), dtype=jnp.float32)

    # deterministic PyTorch-Linear-style init: U(-1/sqrt(fan_in), 1/sqrt(fan_in))
    lim1 = 1.0 / math.sqrt(H)
    w1 = jax.random.uniform(k1, (H, inner), jnp.float32, -lim1, lim1)
    b1 = jax.random.uniform(k2, (inner,), jnp.float32, -lim1, lim1)
    lim2 = 1.0 / math.sqrt(inner)
    w2 = jax.random.uniform(k3, (inner, H), jnp.float32, -lim2, lim2)
    b2 = jax.random.uniform(k4, (H,), jnp.float32, -lim2, lim2)
    gamma = jnp.ones((H,), jnp.float32)
    beta = jnp.zeros((H,), jnp.float32)

    ref = reference(x, w1, b1, w2, b2, gamma, beta)

    # fp32 path: exact parity with the PyTorch module
    out = feedforward(x, w1, b1, w2, b2, gamma, beta)
    out = jax.block_until_ready(out)
    assert out.shape == (B, S, H)
    assert jnp.allclose(out, ref, rtol=1e-5, atol=1e-5), "fp32 mismatch vs reference"

    # bf16 MXU-input path (fp32 accumulation): looser tolerance
    out_bf16 = feedforward(x, w1, b1, w2, b2, gamma, beta, use_bf16=True)
    out_bf16 = jax.block_until_ready(out_bf16)
    assert jnp.allclose(out_bf16, ref, rtol=3e-2, atol=3e-2), "bf16 mismatch vs reference"

    print("KERNEL_OK")
</pallas_src>

<mosaic_0001>
module attributes {stable_mosaic.version = 11 : i64} {
  func.func @feedforward_kernel(%arg0: i32, %arg1: memref<8x32xf32, #tpu.memory_space<vmem>>, %arg2: memref<32x128xf32, #tpu.memory_space<vmem>>, %arg3: memref<1x128xf32, #tpu.memory_space<vmem>>, %arg4: memref<128x32xf32, #tpu.memory_space<vmem>>, %arg5: memref<1x32xf32, #tpu.memory_space<vmem>>, %arg6: memref<1x32xf32, #tpu.memory_space<vmem>>, %arg7: memref<1x32xf32, #tpu.memory_space<vmem>>, %arg8: memref<8x32xf32, #tpu.memory_space<vmem>>) attributes {dimension_semantics = [#tpu.dimension_semantics<parallel>], iteration_bounds = array<i64: 2>, scalar_prefetch = 0 : i64, scratch_operands = 0 : i64, tpu.core_type = #tpu.core_type<tc>, window_params = [{transform_indices = @transform_0, window_bounds = array<i64: 8, 32>}, {pipeline_mode = #tpu.pipeline_mode<synchronous>, transform_indices = @transform_1, window_bounds = array<i64: 32, 128>}, {pipeline_mode = #tpu.pipeline_mode<synchronous>, transform_indices = @transform_2, window_bounds = array<i64: 1, 128>}, {pipeline_mode = #tpu.pipeline_mode<synchronous>, transform_indices = @transform_3, window_bounds = array<i64: 128, 32>}, {pipeline_mode = #tpu.pipeline_mode<synchronous>, transform_indices = @transform_4, window_bounds = array<i64: 1, 32>}, {pipeline_mode = #tpu.pipeline_mode<synchronous>, transform_indices = @transform_5, window_bounds = array<i64: 1, 32>}, {pipeline_mode = #tpu.pipeline_mode<synchronous>, transform_indices = @transform_6, window_bounds = array<i64: 1, 32>}, {transform_indices = @transform_7, window_bounds = array<i64: 8, 32>}]} {
    %c0 = arith.constant 0 : index
    %c0_0 = arith.constant 0 : index
    %0 = vector.load %arg1[%c0, %c0_0] : memref<8x32xf32, #tpu.memory_space<vmem>>, vector<8x32xf32>
    %c0_1 = arith.constant 0 : index
    %c0_2 = arith.constant 0 : index
    %1 = vector.load %arg2[%c0_1, %c0_2] : memref<32x128xf32, #tpu.memory_space<vmem>>, vector<32x128xf32>
    %c0_3 = arith.constant 0 : index
    %c0_4 = arith.constant 0 : index
    %2 = vector.load %arg4[%c0_3, %c0_4] : memref<128x32xf32, #tpu.memory_space<vmem>>, vector<128x32xf32>
    %cst = arith.constant dense<0.000000e+00> : vector<8x128xf32>
    %3 = tpu.matmul %0, %1, %cst {dimension_numbers = #tpu.dot_dimension_numbers<[1], [0], [0], [1], [0, 0, 1, 1], [], []>} : vector<8x32xf32>, vector<32x128xf32>, vector<8x128xf32> -> vector<8x128xf32>
    %c0_5 = arith.constant 0 : index
    %c0_6 = arith.constant 0 : index
    %4 = vector.load %arg3[%c0_5, %c0_6] : memref<1x128xf32, #tpu.memory_space<vmem>>, vector<1x128xf32>
    %5 = vector.broadcast %4 : vector<1x128xf32> to vector<8x128xf32>
    %6 = arith.addf %3, %5 : vector<8x128xf32>
    %cst_7 = arith.constant 5.000000e-01 : f32
    %7 = vector.broadcast %cst_7 : f32 to vector<8x128xf32>
    %8 = arith.mulf %6, %7 : vector<8x128xf32>
    %cst_8 = arith.constant 0.707106769 : f32
    %9 = vector.broadcast %cst_8 : f32 to vector<8x128xf32>
    %10 = arith.mulf %6, %9 : vector<8x128xf32>
    %11 = math.erf %10 : vector<8x128xf32>
    %cst_9 = arith.constant 1.000000e+00 : f32
    %12 = vector.broadcast %cst_9 : f32 to vector<8x128xf32>
    %13 = arith.addf %12, %11 : vector<8x128xf32>
    %14 = arith.mulf %8, %13 : vector<8x128xf32>
    %cst_10 = arith.constant dense<0.000000e+00> : vector<8x32xf32>
    %15 = tpu.matmul %14, %2, %cst_10 {dimension_numbers = #tpu.dot_dimension_numbers<[1], [0], [0], [1], [0, 0, 1, 1], [], []>} : vector<8x128xf32>, vector<128x32xf32>, vector<8x32xf32> -> vector<8x32xf32>
    %c0_11 = arith.constant 0 : index
    %c0_12 = arith.constant 0 : index
    %16 = vector.load %arg5[%c0_11, %c0_12] : memref<1x32xf32, #tpu.memory_space<vmem>>, vector<1x32xf32>
    %17 = vector.broadcast %16 : vector<1x32xf32> to vector<8x32xf32>
    %18 = arith.addf %15, %17 : vector<8x32xf32>
    %19 = arith.addf %18, %0 : vector<8x32xf32>
    %cst_13 = arith.constant dense<0.000000e+00> : vector<8xf32>
    %20 = vector.multi_reduction <add>, %19, %cst_13 [1] : vector<8x32xf32> to vector<8xf32>
    %21 = vector.shape_cast %20 : vector<8xf32> to vector<8x1xf32>
    %cst_14 = arith.constant 3.200000e+01 : f32
    %22 = vector.broadcast %cst_14 : f32 to vector<8x1xf32>
    %23 = arith.divf %21, %22 : vector<8x1xf32>
    %24 = vector.broadcast %23 : vector<8x1xf32> to vector<8x32xf32>
    %25 = arith.subf %19, %24 : vector<8x32xf32>
    %26 = arith.mulf %25, %25 : vector<8x32xf32>
    %cst_15 = arith.constant dense<0.000000e+00> : vector<8xf32>
    %27 = vector.multi_reduction <add>, %26, %cst_15 [1] : vector<8x32xf32> to vector<8xf32>
    %28 = vector.shape_cast %27 : vector<8xf32> to vector<8x1xf32>
    %cst_16 = arith.constant 3.200000e+01 : f32
    %29 = vector.broadcast %cst_16 : f32 to vector<8x1xf32>
    %30 = arith.divf %28, %29 : vector<8x1xf32>
    %cst_17 = arith.constant 9.99999996E-13 : f32
    %31 = vector.broadcast %cst_17 : f32 to vector<8x1xf32>
    %32 = arith.addf %30, %31 : vector<8x1xf32>
    %33 = math.rsqrt %32 : vector<8x1xf32>
    %34 = vector.broadcast %33 : vector<8x1xf32> to vector<8x32xf32>
    %35 = arith.mulf %25, %34 : vector<8x32xf32>
    %c0_18 = arith.constant 0 : index
    %c0_19 = arith.constant 0 : index
    %36 = vector.load %arg6[%c0_18, %c0_19] : memref<1x32xf32, #tpu.memory_space<vmem>>, vector<1x32xf32>
    %37 = vector.broadcast %36 : vector<1x32xf32> to vector<8x32xf32>
    %38 = arith.mulf %37, %35 : vector<8x32xf32>
    %c0_20 = arith.constant 0 : index
    %c0_21 = arith.constant 0 : index
    %39 = vector.load %arg7[%c0_20, %c0_21] : memref<1x32xf32, #tpu.memory_space<vmem>>, vector<1x32xf32>
    %40 = vector.broadcast %39 : vector<1x32xf32> to vector<8x32xf32>
    %41 = arith.addf %38, %40 : vector<8x32xf32>
    %c0_22 = arith.constant 0 : index
    %c0_23 = arith.constant 0 : index
    %42 = vector.load %arg8[%c0_22, %c0_23] : memref<8x32xf32, #tpu.memory_space<vmem>>, vector<8x32xf32>
    tpu.vector_store %arg8[%c0_22, %c0_23], %41 {strides = array<i32>} : memref<8x32xf32, #tpu.memory_space<vmem>>, vector<8x32xf32>,
    return
  }
  func.func @transform_0(%arg0: i32) -> (i32, i32) {
    %c0_i32 = arith.constant 0 : i32
    %c0_i32_0 = arith.constant 0 : i32
    return %arg0, %c0_i32 : i32, i32
  }
  func.func @transform_1(%arg0: i32) -> (i32, i32) {
    %c0_i32 = arith.constant 0 : i32
    %c0_i32_0 = arith.constant 0 : i32
    %c0_i32_1 = arith.constant 0 : i32
    return %c0_i32, %c0_i32_0 : i32, i32
  }
  func.func @transform_2(%arg0: i32) -> (i32, i32) {
    %c0_i32 = arith.constant 0 : i32
    %c0_i32_0 = arith.constant 0 : i32
    %c0_i32_1 = arith.constant 0 : i32
    return %c0_i32, %c0_i32_0 : i32, i32
  }
  func.func @transform_3(%arg0: i32) -> (i32, i32) {
    %c0_i32 = arith.constant 0 : i32
    %c0_i32_0 = arith.constant 0 : i32
    %c0_i32_1 = arith.constant 0 : i32
    return %c0_i32, %c0_i32_0 : i32, i32
  }
  func.func @transform_4(%arg0: i32) -> (i32, i32) {
    %c0_i32 = arith.constant 0 : i32
    %c0_i32_0 = arith.constant 0 : i32
    %c0_i32_1 = arith.constant 0 : i32
    return %c0_i32, %c0_i32_0 : i32, i32
  }
  func.func @transform_5(%arg0: i32) -> (i32, i32) {
    %c0_i32 = arith.constant 0 : i32
    %c0_i32_0 = arith.constant 0 : i32
    %c0_i32_1 = arith.constant 0 : i32
    return %c0_i32, %c0_i32_0 : i32, i32
  }
  func.func @transform_6(%arg0: i32) -> (i32, i32) {
    %c0_i32 = arith.constant 0 : i32
    %c0_i32_0 = arith.constant 0 : i32
    %c0_i32_1 = arith.constant 0 : i32
    return %c0_i32, %c0_i32_0 : i32, i32
  }
  func.func @transform_7(%arg0: i32) -> (i32, i32) {
    %c0_i32 = arith.constant 0 : i32
    %c0_i32_0 = arith.constant 0 : i32
    return %arg0, %c0_i32 : i32, i32
  }
}

</mosaic_0001>

<llo_original>
// kernel: tpu_custom_call.1
$region0: #{tpu_custom_call.1}
  #allocation0 [shape = 'u32[]', space=smem, size = 0x4, offset = 0x4, fixed_abs, tag = 'smem constant byte address 0x4 - core index']
  #allocation1 [shape = 'u32[144,128]{1,0:T(1,128)}', space=vmem, size = 0x12000, scoped, tag = 'internal scratch']
  %s0 = inlined_call_operand.vmem [shape: f32[16,32], index: 0, kind: input, shape index: {}]
  %s1 = inlined_call_operand.vmem [shape: f32[32,128], index: 1, kind: input, shape index: {}]
  %s2 = inlined_call_operand.vmem [shape: f32[1,128], index: 2, kind: input, shape index: {}]
  %s3 = inlined_call_operand.vmem [shape: f32[128,32], index: 3, kind: input, shape index: {}]
  %s4 = inlined_call_operand.vmem [shape: f32[1,32], index: 4, kind: input, shape index: {}]
  %s5 = inlined_call_operand.vmem [shape: f32[1,32], index: 5, kind: input, shape index: {}]
  %s6 = inlined_call_operand.vmem [shape: f32[1,32], index: 6, kind: input, shape index: {}]
  %s7 = inlined_call_operand.hbm [shape: f32[16,32], index: 7, kind: output, shape index: {}]
  %s8 = sld [smem:[#allocation0]]
  $region61: #{tpu_custom_call.1} parent=0
    _
  %s10 = ssub.s32 1, %s8
  %s11 = scalar_select 0, %s10, %s8
  $region1: #{tpu_custom_call.1} parent=0
    #allocation2 [shape = 'u8[8192]{0}', space=vmem, size = 0x2000, scoped, tag = 'output window, operand 0']
    #allocation3 [shape = 's32[2]{0}', space=sflag, size = 0x8, scoped, tag = 'scoped memory for tpu_custom_call.1']
    %12 = vsyncpa [#allocation3], 0
    %s13 = scalar_lea.sflag [#allocation3], 1
    %14 = vsyncpa %s13, 0
    loop: start=0, step=1, limit=4
    $region2: #{tpu_custom_call.1} parent=1 // loop_pre_header
      _
    $region3: #{tpu_custom_call.1} parent=1 // loop_header
      %s16 = sphi 0, %s20
      %p17 = scmp.ge.s32.totalorder %s16, 4
      %s26 = sphi 0, %s28
      %s29 = sphi 0, %s26
      %s30 = sphi 0, %s29
      %s46 = sphi 0, %s30
      %s50 = sphi 0, %s50
      %s52 = sphi 0, %s50
      %s53 = sphi 0, %s52
      %s67 = sphi 0, %s53
      %s71 = sphi 0, %s71
      %s73 = sphi 0, %s71
      %s74 = sphi 0, %s73
      %s88 = sphi 0, %s74
      %s92 = sphi 0, %s92
      %s94 = sphi 0, %s92
      %s95 = sphi 0, %s94
      %s109 = sphi 0, %s95
      %s113 = sphi 0, %s113
      %s115 = sphi 0, %s113
      %s116 = sphi 0, %s115
      %s130 = sphi 0, %s116
      %s134 = sphi 0, %s134
      %s136 = sphi 0, %s134
      %s137 = sphi 0, %s136
      %s151 = sphi 0, %s137
      %s155 = sphi 0, %s155
      %s157 = sphi 0, %s155
      %s158 = sphi 0, %s157
      %s172 = sphi 0, %s158
      %s178 = sphi 0, %s180
      %s181 = sphi 0, %s178
      %s182 = sphi 0, %s181
      %s198 = sphi 0, %s182
    $region4: #{tpu_custom_call.1} parent=1 // loop_header_branch
      %19 = sbr.rel (%p17) target = $region8
    $region5: #{tpu_custom_call.1} parent=1 // loop_body
      %s21 = ssub.s32 %s16, 1
      %s22 = ssub.s32 %s16, 2
      %s23 = sadd.s32 %s16, 1
      %s24 = ssub.s32 %s16, %s23
      %p25 = scmp.eq.s32.totalorder %s24, 0
      %s27 = sadd.s32 %s26, 1
      %s28 = scalar_select %p25, %s26, %s27
      %p31 = pneg %p25
      %p32 = scmp.eq.s32.totalorder %s16, 1
      %p33 = por %p31, %p32
      %p34 = scmp.ne.s32.totalorder %s26, %s29
      %p35 = scmp.eq.s32.totalorder %s16, 0
      %p36 = por %p34, %p35
      %p37 = scmp.ne.s32.totalorder %s26, %s29
      %p38 = scmp.eq.s32.totalorder %s21, 1
      %p39 = por %p37, %p38
      %p40 = scmp.ne.s32.totalorder %s29, %s30
      %p41 = scmp.eq.s32.totalorder %s21, 0
      %p42 = por %p40, %p41
      %p43 = scmp.ne.s32.totalorder %s29, %s30
      %p44 = scmp.eq.s32.totalorder %s22, 1
      %p45 = por %p43, %p44
      %p47 = scmp.ne.s32.totalorder %s30, %s46
      %p48 = scmp.eq.s32.totalorder %s22, 0
      %p49 = por %p47, %p48
      %s51 = sadd.s32 %s50, 1
      %p54 = scmp.eq.s32.totalorder %s16, 1
      %p55 = scmp.ne.s32.totalorder %s50, %s52
      %p56 = scmp.eq.s32.totalorder %s16, 0
      %p57 = por %p55, %p56
      %p58 = scmp.ne.s32.totalorder %s50, %s52
      %p59 = scmp.eq.s32.totalorder %s21, 1
      %p60 = por %p58, %p59
      %p61 = scmp.ne.s32.totalorder %s52, %s53
      %p62 = scmp.eq.s32.totalorder %s21, 0
      %p63 = por %p61, %p62
      %p64 = scmp.ne.s32.totalorder %s52, %s53
      %p65 = scmp.eq.s32.totalorder %s22, 1
      %p66 = por %p64, %p65
      %p68 = scmp.ne.s32.totalorder %s53, %s67
      %p69 = scmp.eq.s32.totalorder %s22, 0
      %p70 = por %p68, %p69
      %s72 = sadd.s32 %s71, 1
      %p75 = scmp.eq.s32.totalorder %s16, 1
      %p76 = scmp.ne.s32.totalorder %s71, %s73
      %p77 = scmp.eq.s32.totalorder %s16, 0
      %p78 = por %p76, %p77
      %p79 = scmp.ne.s32.totalorder %s71, %s73
      %p80 = scmp.eq.s32.totalorder %s21, 1
      %p81 = por %p79, %p80
      %p82 = scmp.ne.s32.totalorder %s73, %s74
      %p83 = scmp.eq.s32.totalorder %s21, 0
      %p84 = por %p82, %p83
      %p85 = scmp.ne.s32.totalorder %s73, %s74
      %p86 = scmp.eq.s32.totalorder %s22, 1
      %p87 = por %p85, %p86
      %p89 = scmp.ne.s32.totalorder %s74, %s88
      %p90 = scmp.eq.s32.totalorder %s22, 0
      %p91 = por %p89, %p90
      %s93 = sadd.s32 %s92, 1
      %p96 = scmp.eq.s32.totalorder %s16, 1
      %p97 = scmp.ne.s32.totalorder %s92, %s94
      %p98 = scmp.eq.s32.totalorder %s16, 0
      %p99 = por %p97, %p98
      %p100 = scmp.ne.s32.totalorder %s92, %s94
      %p101 = scmp.eq.s32.totalorder %s21, 1
      %p102 = por %p100, %p101
      %p103 = scmp.ne.s32.totalorder %s94, %s95
      %p104 = scmp.eq.s32.totalorder %s21, 0
      %p105 = por %p103, %p104
      %p106 = scmp.ne.s32.totalorder %s94, %s95
      %p107 = scmp.eq.s32.totalorder %s22, 1
      %p108 = por %p106, %p107
      %p110 = scmp.ne.s32.totalorder %s95, %s109
      %p111 = scmp.eq.s32.totalorder %s22, 0
      %p112 = por %p110, %p111
      %s114 = sadd.s32 %s113, 1
      %p117 = scmp.eq.s32.totalorder %s16, 1
      %p118 = scmp.ne.s32.totalorder %s113, %s115
      %p119 = scmp.eq.s32.totalorder %s16, 0
      %p120 = por %p118, %p119
      %p121 = scmp.ne.s32.totalorder %s113, %s115
      %p122 = scmp.eq.s32.totalorder %s21, 1
      %p123 = por %p121, %p122
      %p124 = scmp.ne.s32.totalorder %s115, %s116
      %p125 = scmp.eq.s32.totalorder %s21, 0
      %p126 = por %p124, %p125
      %p127 = scmp.ne.s32.totalorder %s115, %s116
      %p128 = scmp.eq.s32.totalorder %s22, 1
      %p129 = por %p127, %p128
      %p131 = scmp.ne.s32.totalorder %s116, %s130
      %p132 = scmp.eq.s32.totalorder %s22, 0
      %p133 = por %p131, %p132
      %s135 = sadd.s32 %s134, 1
      %p138 = scmp.eq.s32.totalorder %s16, 1
      %p139 = scmp.ne.s32.totalorder %s134, %s136
      %p140 = scmp.eq.s32.totalorder %s16, 0
      %p141 = por %p139, %p140
      %p142 = scmp.ne.s32.totalorder %s134, %s136
      %p143 = scmp.eq.s32.totalorder %s21, 1
      %p144 = por %p142, %p143
      %p145 = scmp.ne.s32.totalorder %s136, %s137
      %p146 = scmp.eq.s32.totalorder %s21, 0
      %p147 = por %p145, %p146
      %p148 = scmp.ne.s32.totalorder %s136, %s137
      %p149 = scmp.eq.s32.totalorder %s22, 1
      %p150 = por %p148, %p149
      %p152 = scmp.ne.s32.totalorder %s137, %s151
      %p153 = scmp.eq.s32.totalorder %s22, 0
      %p154 = por %p152, %p153
      %s156 = sadd.s32 %s155, 1
      %p159 = scmp.eq.s32.totalorder %s16, 1
      %p160 = scmp.ne.s32.totalorder %s155, %s157
      %p161 = scmp.eq.s32.totalorder %s16, 0
      %p162 = por %p160, %p161
      %p163 = scmp.ne.s32.totalorder %s155, %s157
      %p164 = scmp.eq.s32.totalorder %s21, 1
      %p165 = por %p163, %p164
      %p166 = scmp.ne.s32.totalorder %s157, %s158
      %p167 = scmp.eq.s32.totalorder %s21, 0
      %p168 = por %p166, %p167
      %p169 = scmp.ne.s32.totalorder %s157, %s158
      %p170 = scmp.eq.s32.totalorder %s22, 1
      %p171 = por %p169, %p170
      %p173 = scmp.ne.s32.totalorder %s158, %s172
      %p174 = scmp.eq.s32.totalorder %s22, 0
      %p175 = por %p173, %p174
      %s176 = ssub.s32 %s16, %s23
      %p177 = scmp.eq.s32.totalorder %s176, 0
      %s179 = sadd.s32 %s178, 1
      %s180 = scalar_select %p177, %s178, %s179
      %p183 = pneg %p177
      %p184 = scmp.eq.s32.totalorder %s16, 1
      %p185 = por %p183, %p184
      %p186 = scmp.ne.s32.totalorder %s178, %s181
      %p187 = scmp.eq.s32.totalorder %s16, 0
      %p188 = por %p186, %p187
      %p189 = scmp.ne.s32.totalorder %s178, %s181
      %p190 = scmp.eq.s32.totalorder %s21, 1
      %p191 = por %p189, %p190
      %p192 = scmp.ne.s32.totalorder %s181, %s182
      %p193 = scmp.eq.s32.totalorder %s21, 0
      %p194 = por %p192, %p193
      %p195 = scmp.ne.s32.totalorder %s181, %s182
      %p196 = scmp.eq.s32.totalorder %s22, 1
      %p197 = por %p195, %p196
      %p199 = scmp.ne.s32.totalorder %s182, %s198
      %p200 = scmp.eq.s32.totalorder %s22, 0
      %p201 = por %p199, %p200
      %p202 = scmp.le.s32.totalorder 1, %s16
      %p203 = scmp.lt.s32.totalorder %s16, 3
      %p204 = pnand %p202, %p203
      %p205 = pneg %p204
      // Predicated region
      $region9: #{tpu_custom_call.1} parent=5 // pred_check
        _
      $region10: #{tpu_custom_call.1} parent=5 // pred_check_branch
        %207 = sbr.rel (%p204) target = $region12
      $region11: #{tpu_custom_call.1} parent=5 // pred_region
        %s208 = ssub.s32 %s16, 1
        // Predicated region
        $region13: #{tpu_custom_call.1} parent=11 // pred_check
          %p209 = pneg %p63
        $region14: #{tpu_custom_call.1} parent=11 // pred_check_branch
          %211 = sbr.rel (%p209) target = $region16
        $region15: #{tpu_custom_call.1} parent=11 // pred_region
          _
        $region16: #{tpu_custom_call.1} parent=11 // pred_fallthru
          _
        // Predicated region
        $region17: #{tpu_custom_call.1} parent=11 // pred_check
          %p212 = pneg %p84
        $region18: #{tpu_custom_call.1} parent=11 // pred_check_branch
          %214 = sbr.rel (%p212) target = $region20
        $region19: #{tpu_custom_call.1} parent=11 // pred_region
          _
        $region20: #{tpu_custom_call.1} parent=11 // pred_fallthru
          _
        // Predicated region
        $region21: #{tpu_custom_call.1} parent=11 // pred_check
          %p215 = pneg %p105
        $region22: #{tpu_custom_call.1} parent=11 // pred_check_branch
          %217 = sbr.rel (%p215) target = $region24
        $region23: #{tpu_custom_call.1} parent=11 // pred_region
          _
        $region24: #{tpu_custom_call.1} parent=11 // pred_fallthru
          _
        // Predicated region
        $region25: #{tpu_custom_call.1} parent=11 // pred_check
          %p218 = pneg %p126
        $region26: #{tpu_custom_call.1} parent=11 // pred_check_branch
          %220 = sbr.rel (%p218) target = $region28
        $region27: #{tpu_custom_call.1} parent=11 // pred_region
          _
        $region28: #{tpu_custom_call.1} parent=11 // pred_fallthru
          _
        // Predicated region
        $region29: #{tpu_custom_call.1} parent=11 // pred_check
          %p221 = pneg %p147
        $region30: #{tpu_custom_call.1} parent=11 // pred_check_branch
          %223 = sbr.rel (%p221) target = $region32
        $region31: #{tpu_custom_call.1} parent=11 // pred_region
          _
        $region32: #{tpu_custom_call.1} parent=11 // pred_fallthru
          _
        // Predicated region
        $region33: #{tpu_custom_call.1} parent=11 // pred_check
          %p224 = pneg %p168
        $region34: #{tpu_custom_call.1} parent=11 // pred_check_branch
          %226 = sbr.rel (%p224) target = $region36
        $region35: #{tpu_custom_call.1} parent=11 // pred_region
          _
        $region36: #{tpu_custom_call.1} parent=11 // pred_fallthru
          _
      $region12: #{tpu_custom_call.1} parent=5 // pred_fallthru
        _
      %p227 = scmp.lt.s32.totalorder %s16, 2
      // Predicated region
      $region37: #{tpu_custom_call.1} parent=5 // pred_check
        %p228 = pneg %p227
      $region38: #{tpu_custom_call.1} parent=5 // pred_check_branch
        %230 = sbr.rel (%p228) target = $region40
      $region39: #{tpu_custom_call.1} parent=5 // pred_region
        // Predicated region
        $region41: #{tpu_custom_call.1} parent=39 // pred_check
          %p231 = pneg %p36
        $region42: #{tpu_custom_call.1} parent=39 // pred_check_branch
          %233 = sbr.rel (%p231) target = $region44
        $region43: #{tpu_custom_call.1} parent=39 // pred_region
          %p234 = scmp.lt.s32.totalorder %s16, 1
          %s235 = scalar_select %p234, %s16, 1
          %s236 = smul.addr %s235, 8
          %s237 = scalar_lea.vmem %s0, %s236
        $region44: #{tpu_custom_call.1} parent=39 // pred_fallthru
          _
      $region40: #{tpu_custom_call.1} parent=5 // pred_fallthru
        _
      %p238 = scmp.le.s32.totalorder 1, %s16
      %p239 = scmp.lt.s32.totalorder %s16, 3
      %p240 = pnand %p238, %p239
      %p241 = pneg %p240
      // Predicated region
      $region45: #{tpu_custom_call.1} parent=5 // pred_check
        _
      $region46: #{tpu_custom_call.1} parent=5 // pred_check_branch
        %243 = sbr.rel (%p240) target = $region48
      $region47: #{tpu_custom_call.1} parent=5 // pred_region
        %s244 = ssub.s32 %s16, 1
        %p245 = scmp.lt.s32.totalorder %s21, 1
        %s246 = scalar_select %p245, %s21, 1
        %s247 = smul.addr %s246, 8
        %s248 = scalar_lea.vmem %s0, %s247
        %p249 = pneg %p42
        %p250 = pneg %p39
        %p251 = pneg %p63
        %p252 = pneg %p60
        %p253 = pneg %p84
        %p254 = pneg %p81
        %p255 = pneg %p105
        %p256 = pneg %p102
        %p257 = pneg %p126
        %p258 = pneg %p123
        %p259 = pneg %p147
        %p260 = pneg %p144
        %p261 = pneg %p168
        %p262 = pneg %p165
        %p263 = pneg %p194
        %p264 = pneg %p191
        %s265 = sand.u32 %s181, 1
        %s266 = scalar_lea.sflag [#allocation3], %s265
        %s267 = sand.u32 %s181, 1
        %s268 = smul.addr %s267, 8
        %s269 = scalar_lea.vmem [#allocation2], %s268
        %p270 = scmp.lt.s32.totalorder %s21, 1
        %s271 = scalar_select %p270, %s21, 1
        %s272 = smul.addr %s271, 8
        %s273 = scalar_lea.vmem %s0, %s272
        %v274 = vld [vmem:[%s273] sm:$0xff]
        %v275 = vld [vmem:[%s1] sm:$0xff]
        %v276 = vld [vmem:[%s1 + $0x8] sm:$0xff]
        %v277 = vld [vmem:[%s1 + $0x10] sm:$0xff]
        %v278 = vld [vmem:[%s1 + $0x18] sm:$0xff]
        %v279 = vld [vmem:[%s3] sm:$0xff]
        %v280 = vld [vmem:[%s3 + $0x8] sm:$0xff]
        %v281 = vld [vmem:[%s3 + $0x10] sm:$0xff]
        %v282 = vld [vmem:[%s3 + $0x18] sm:$0xff]
        %v283 = vld [vmem:[%s3 + $0x20] sm:$0xff]
        %v284 = vld [vmem:[%s3 + $0x28] sm:$0xff]
        %v285 = vld [vmem:[%s3 + $0x30] sm:$0xff]
        %v286 = vld [vmem:[%s3 + $0x38] sm:$0xff]
        %v287 = vld [vmem:[%s3 + $0x40] sm:$0xff]
        %v288 = vld [vmem:[%s3 + $0x48] sm:$0xff]
        %v289 = vld [vmem:[%s3 + $0x50] sm:$0xff]
        %v290 = vld [vmem:[%s3 + $0x58] sm:$0xff]
        %v291 = vld [vmem:[%s3 + $0x60] sm:$0xff]
        %v292 = vld [vmem:[%s3 + $0x68] sm:$0xff]
        %v293 = vld [vmem:[%s3 + $0x70] sm:$0xff]
        %v294 = vld [vmem:[%s3 + $0x78] sm:$0xff]
        %v295 = vld [vmem:[%s2] sm:$0x1]
        %v297 = vlaneseq
        %v298 = vshrl.u32 %v297, 7
        %v299 = vsub.s32 0, %v298
        %v300 = vrot.slane %v295, %v299
        %vm302 = vcmask 261120
        %v304 = vsel %vm302, %v274, 0
        %306 = vmatprep.subr.mxu0 0.0
        %307 = vmatpush1.msra.mxu0 %v275
        %308 = vmatprep.subr.mxu0 0.0
        %309 = vmatpush1.msra.mxu0 %v276
        %310 = vmatprep.subr.mxu0 0.0
        %311 = vmatpush1.msra.mxu0 %v277
        %312 = vmatprep.subr.mxu0 0.0
        %313 = vmatpush1.msra.mxu0 %v278
        %314 = vmatprep.subr.mxu0 0.0
        %315 = vmatpush1.msra.mxu0 0.0
        %316 = vmatprep.subr.mxu0 0.0
        %317 = vmatpush1.msra.mxu0 0.0
        %318 = vmatprep.subr.mxu0 0.0
        %319 = vmatpush1.msra.mxu0 0.0
        %320 = vmatprep.subr.mxu0 0.0
        %321 = vmatpush1.msra.mxu0 0.0
        %322 = vmatprep.subr.mxu0 0.0
        %323 = vmatpush1.msra.mxu0 0.0
        %324 = vmatprep.subr.mxu0 0.0
        %325 = vmatpush1.msra.mxu0 0.0
        %326 = vmatprep.subr.mxu0 0.0
        %327 = vmatpush1.msra.mxu0 0.0
        %328 = vmatprep.subr.mxu0 0.0
        %329 = vmatpush1.msra.mxu0 0.0
        %330 = vmatprep.subr.mxu0 0.0
        %331 = vmatpush1.msra.mxu0 0.0
        %332 = vmatprep.subr.mxu0 0.0
        %333 = vmatpush1.msra.mxu0 0.0
        %334 = vmatprep.subr.mxu0 0.0
        %335 = vmatpush1.msra.mxu0 0.0
        %336 = vmatprep.subr.mxu0 0.0
        %337 = vmatpush1.msra.mxu0 0.0
        %338 = vmatprep.subr.mxu0 0.0
        %339 = vmatpush1.msra.mxu0 0.0
        %340 = vmatprep.subr.mxu0 0.0
        %341 = vmatpush1.msra.mxu0 0.0
        %342 = vmatprep.subr.mxu0 0.0
        %343 = vmatpush1.msra.mxu0 0.0
        %344 = vmatprep.subr.mxu0 0.0
        %345 = vmatpush1.msra.mxu0 0.0
        %346 = vmatprep.subr.mxu0 0.0
        %347 = vmatpush1.msra.mxu0 0.0
        %348 = vmatprep.subr.mxu0 0.0
        %349 = vmatpush1.msra.mxu0 0.0
        %350 = vmatprep.subr.mxu0 0.0
        %351 = vmatpush1.msra.mxu0 0.0
        %352 = vmatprep.subr.mxu0 0.0
        %353 = vmatpush1.msra.mxu0 0.0
        %354 = vmatprep.subr.mxu0 0.0
        %355 = vmatpush1.msra.mxu0 0.0
        %356 = vmatprep.subr.mxu0 0.0
        %357 = vmatpush1.msra.mxu0 0.0
        %358 = vmatprep.subr.mxu0 0.0
        %359 = vmatpush1.msra.mxu0 0.0
        %360 = vmatprep.subr.mxu0 0.0
        %361 = vmatpush1.msra.mxu0 0.0
        %362 = vmatprep.subr.mxu0 0.0
        %363 = vmatpush1.msra.mxu0 0.0
        %364 = vmatprep.subr.mxu0 0.0
        %365 = vmatpush1.msra.mxu0 0.0
        %366 = vmatprep.subr.mxu0 0.0
        %367 = vmatpush1.msra.mxu0 0.0
        %368 = vmatprep.subr.mxu0 0.0
        %369 = vmatpush1.msra.mxu0 0.0
        %370 = vmatprep.mubr.f32.mxu0 0.0
        %371 = vmatmul.mubr.f32.gmra.mrb[0].mxu0 %v304
        %v372 = vpop.f32.mrb[0].mxu0
        %v373 = vadd.f32 %v300, %v372
        %v374 = vpop.f32.mrb[0].mxu0
        %375 = vdwg.mxu0
        %v376 = vmul.f32 %v373, 0.5
        %v377 = vmul.f32 %v373, 0.70710677
        %v378 = verf.f32.pop %v377
        %v379 = vadd.f32 %v378, 1.0
        %v380 = vmul.f32 %v376, %v379
        %v381 = vld [vmem:[%s4] sm:$0x1]
        %v383 = vlaneseq
        %v384 = vshrl.u32 %v383, 7
        %v385 = vsub.s32 0, %v384
        %v386 = vrot.slane %v381, %v385
        %388 = vmatprep.subr.mxu0 0.0
        %389 = vmatpush1.msra.mxu0 %v279
        %390 = vmatprep.subr.mxu0 0.0
        %391 = vmatpush1.msra.mxu0 %v280
        %392 = vmatprep.subr.mxu0 0.0
        %393 = vmatpush1.msra.mxu0 %v281
        %394 = vmatprep.subr.mxu0 0.0
        %395 = vmatpush1.msra.mxu0 %v282
        %396 = vmatprep.subr.mxu0 0.0
        %397 = vmatpush1.msra.mxu0 %v283
        %398 = vmatprep.subr.mxu0 0.0
        %399 = vmatpush1.msra.mxu0 %v284
        %400 = vmatprep.subr.mxu0 0.0
        %401 = vmatpush1.msra.mxu0 %v285
        %402 = vmatprep.subr.mxu0 0.0
        %403 = vmatpush1.msra.mxu0 %v286
        %404 = vmatprep.subr.mxu0 0.0
        %405 = vmatpush1.msra.mxu0 %v287
        %406 = vmatprep.subr.mxu0 0.0
        %407 = vmatpush1.msra.mxu0 %v288
        %408 = vmatprep.subr.mxu0 0.0
        %409 = vmatpush1.msra.mxu0 %v289
        %410 = vmatprep.subr.mxu0 0.0
        %411 = vmatpush1.msra.mxu0 %v290
        %412 = vmatprep.subr.mxu0 0.0
        %413 = vmatpush1.msra.mxu0 %v291
        %414 = vmatprep.subr.mxu0 0.0
        %415 = vmatpush1.msra.mxu0 %v292
        %416 = vmatprep.subr.mxu0 0.0
        %417 = vmatpush1.msra.mxu0 %v293
        %418 = vmatprep.subr.mxu0 0.0
        %419 = vmatpush1.msra.mxu0 %v294
        %420 = vmatprep.subr.mxu0 0.0
        %421 = vmatpush1.msra.mxu0 0.0
        %422 = vmatprep.subr.mxu0 0.0
        %423 = vmatpush1.msra.mxu0 0.0
        %424 = vmatprep.subr.mxu0 0.0
        %425 = vmatpush1.msra.mxu0 0.0
        %426 = vmatprep.subr.mxu0 0.0
        %427 = vmatpush1.msra.mxu0 0.0
        %428 = vmatprep.subr.mxu0 0.0
        %429 = vmatpush1.msra.mxu0 0.0
        %430 = vmatprep.subr.mxu0 0.0
        %431 = vmatpush1.msra.mxu0 0.0
        %432 = vmatprep.subr.mxu0 0.0
        %433 = vmatpush1.msra.mxu0 0.0
        %434 = vmatprep.subr.mxu0 0.0
        %435 = vmatpush1.msra.mxu0 0.0
        %436 = vmatprep.subr.mxu0 0.0
        %437 = vmatpush1.msra.mxu0 0.0
        %438 = vmatprep.subr.mxu0 0.0
        %439 = vmatpush1.msra.mxu0 0.0
        %440 = vmatprep.subr.mxu0 0.0
        %441 = vmatpush1.msra.mxu0 0.0
        %442 = vmatprep.subr.mxu0 0.0
        %443 = vmatpush1.msra.mxu0 0.0
        %444 = vmatprep.subr.mxu0 0.0
        %445 = vmatpush1.msra.mxu0 0.0
        %446 = vmatprep.subr.mxu0 0.0
        %447 = vmatpush1.msra.mxu0 0.0
        %448 = vmatprep.subr.mxu0 0.0
        %449 = vmatpush1.msra.mxu0 0.0
        %450 = vmatprep.subr.mxu0 0.0
        %451 = vmatpush1.msra.mxu0 0.0
        %452 = vmatprep.mubr.f32.mxu0 0.0
        %453 = vmatmul.mubr.f32.gmra.mrb[0].mxu0 %v380
        %v454 = vpop.f32.mrb[0].mxu0
        %v455 = vadd.f32 %v386, %v454
        %v456 = vpop.f32.mrb[0].mxu0
        %457 = vdwg.mxu0
        %v458 = vadd.f32 %v455, %v274
        %v459 = vsel %vm302, %v458, 0.0
        %460 = vadd.xlane.f32.xlu0 %v459
        %v461 = vpop.xlane.xlu0 %460
        %v462 = vrcp.pop 32.0
        %v463 = vmul.f32 %v461, %v462
        %v464 = vsub.f32 %v458, %v463
        %v465 = vmul.f32 %v464, %v464
        %v466 = vsel %vm302, %v465, 0.0
        %467 = vadd.xlane.f32.xlu0 %v466
        %v468 = vpop.xlane.xlu0 %467
        %v469 = vmul.f32 %v468, %v462
        %v470 = vadd.f32 %v469, 1e-12
        %v471 = vrsqrt.pop %v470
        %v472 = vmul.f32 %v464, %v471
        %v473 = vld [vmem:[%s5] sm:$0x1]
        %v475 = vlaneseq
        %v476 = vshrl.u32 %v475, 7
        %v477 = vsub.s32 0, %v476
        %v478 = vrot.slane %v473, %v477
        %v480 = vmul.f32 %v478, %v472
        %v481 = vld [vmem:[%s6] sm:$0x1]
        %v483 = vlaneseq
        %v484 = vshrl.u32 %v483, 7
        %v485 = vsub.s32 0, %v484
        %v486 = vrot.slane %v481, %v485
        %v488 = vadd.f32 %v480, %v486
        %489 = vst.msk [vmem:[%s269] sm:$0xff] %vm302, %v488
        %s490 = sand.u32 %s181, 1
        %s491 = scalar_lea.sflag [#allocation3], %s490
        %s492 = sand.u32 %s181, 1
        %s493 = smul.addr %s492, 8
        %s494 = scalar_lea.vmem [#allocation2], %s493
        // Predicated region
        $region49: #{tpu_custom_call.1} parent=47 // pred_check
          %p495 = pneg %p191
        $region50: #{tpu_custom_call.1} parent=47 // pred_check_branch
          %497 = sbr.rel (%p495) target = $region52
        $region51: #{tpu_custom_call.1} parent=47 // pred_region
          %s499 = ssub.s32 128, 128
          %500 = vsyncadd %s491, %s499
          %s501 = smul.addr %s21, 128
          %s502 = scalar_lea.hbm %s7, %s501
          %s504 = sshll.u32 %s494, 4
          %s505 = int_to_ptr.vmem [resolvable:$true] %s504
          %507 = dma.vmem_to_hbm [thread:$0]  %s505, 128, %s502, %s491
        $region52: #{tpu_custom_call.1} parent=47 // pred_fallthru
          _
      $region48: #{tpu_custom_call.1} parent=5 // pred_fallthru
        _
      %p508 = scmp.le.s32.totalorder 2, %s16
      // Predicated region
      $region53: #{tpu_custom_call.1} parent=5 // pred_check
        %p509 = pneg %p508
      $region54: #{tpu_custom_call.1} parent=5 // pred_check_branch
        %511 = sbr.rel (%p509) target = $region56
      $region55: #{tpu_custom_call.1} parent=5 // pred_region
        %s512 = ssub.s32 %s16, 2
        // Predicated region
        $region57: #{tpu_custom_call.1} parent=55 // pred_check
          %p513 = pneg %p197
        $region58: #{tpu_custom_call.1} parent=55 // pred_check_branch
          %515 = sbr.rel (%p513) target = $region60
        $region59: #{tpu_custom_call.1} parent=55 // pred_region
          %s516 = sand.u32 %s182, 1
          %s517 = scalar_lea.sflag [#allocation3], %s516
          %s518 = sand.u32 %s182, 1
          %s519 = smul.addr %s518, 8
          %s520 = scalar_lea.vmem [#allocation2], %s519
          %521 = dma.done %s517, 128
        $region60: #{tpu_custom_call.1} parent=55 // pred_fallthru
          _
      $region56: #{tpu_custom_call.1} parent=5 // pred_fallthru
        _
    $region6: #{tpu_custom_call.1} parent=1 // loop_footer
      %s20 = sadd.s32 1, %s16
    $region7: #{tpu_custom_call.1} parent=1 // loop_footer_branch
      %15 = sbr.rel target = $region3
    $region8: #{tpu_custom_call.1} parent=1 // loop_exit
      _
    %522 = vsyncpa [#allocation3], 1
    %s523 = scalar_lea.sflag [#allocation3], 1
    %524 = vsyncpa %s523, 1

</llo_original>
